<compile_context>
chip_gen: v7x
topology: tpu7x:2x2x1
jax: 0.10.0
libtpu: 0.0.40
codegen_flags: <defaults>
</compile_context>

<pallas_src>
import functools

import numpy as np
import jax
import jax.numpy as jnp
from jax.experimental import pallas as pl
from jax.experimental.pallas import tpu as pltpu


def _round_up(x, m):
    return -(-x // m) * m


def _split_dim(d, cap, align):
    """Tile size <= cap (multiple of `align`) that splits d with minimal padding."""
    n = -(-d // cap)                                   # number of tiles
    t = min(cap, _round_up(-(-d // n), align))
    return t, _round_up(d, t)                          # (tile, padded extent)


# ----------------------------------------------------------------------------
# Pallas kernel: block-sparse tiled MXU matmul   Y[m, p] = sum_k X[m, k] * Wt[k, p]
# ----------------------------------------------------------------------------
def _resample_kernel(kmap_ref, kcnt_ref, x_ref, wt_ref, o_ref, acc_ref):
    j = pl.program_id(1)
    s = pl.program_id(2)

    @pl.when(s == 0)
    def _():
        acc_ref[...] = jnp.zeros_like(acc_ref)

    # Only accumulate k-blocks in which this j-tile's weight slice has nonzeros
    # (each polar pixel touches just 4 cartesian pixels); padded steps repeat the
    # previous block index, so their DMA is skipped by the pipeline as well.
    @pl.when(s < kcnt_ref[j])
    def _():
        acc_ref[...] += jnp.dot(x_ref[...], wt_ref[...],
                                preferred_element_type=jnp.float32)

    # Cast + store once per output tile, on the final reduction step only.
    @pl.when(s == pl.num_programs(2) - 1)
    def _():
        o_ref[...] = acc_ref[...].astype(o_ref.dtype)


def _pallas_resample(x, wt, kmap, kcount, out_dtype, tm, tn, tk, s_max, nnz_blocks,
                     vmem_limit):
    Mp, Kpad = x.shape
    Kpad2, Npad = wt.shape
    assert Kpad == Kpad2 and Mp % tm == 0 and Npad % tn == 0 and Kpad % tk == 0
    n_i = Mp // tm
    cost = pl.CostEstimate(
        flops=2 * n_i * nnz_blocks * tm * tk * tn,
        transcendentals=0,
        bytes_accessed=(n_i * nnz_blocks * (tm * tk + tk * tn) * x.dtype.itemsize
                        + Mp * Npad * np.dtype(out_dtype).itemsize),
    )
    return pl.pallas_call(
        _resample_kernel,
        out_shape=jax.ShapeDtypeStruct((Mp, Npad), out_dtype),
        grid_spec=pltpu.PrefetchScalarGridSpec(
            num_scalar_prefetch=2,
            grid=(n_i, Npad // tn, s_max),
            in_specs=[
                pl.BlockSpec((tm, tk), lambda i, j, s, kmap, kcnt: (i, kmap[j, s])),
                pl.BlockSpec((tk, tn), lambda i, j, s, kmap, kcnt: (kmap[j, s], j)),
            ],
            out_specs=pl.BlockSpec((tm, tn), lambda i, j, s, kmap, kcnt: (i, j)),
            scratch_shapes=[pltpu.VMEM((tm, tn), jnp.float32)],
        ),
        compiler_params=pltpu.CompilerParams(
            dimension_semantics=("parallel", "parallel", "arbitrary"),
            vmem_limit_bytes=vmem_limit),
        cost_estimate=cost,
    )(kmap, kcount, x, wt)


# ----------------------------------------------------------------------------
# Host-side, generation-aware tile selection.
# ----------------------------------------------------------------------------
def _pick_tiles(M, K, Np, in_dtype, out_dtype):
    try:
        phys = int(getattr(pltpu.get_tpu_info(), "vmem_capacity_bytes", 64 * 2 ** 20))
    except Exception:
        phys = 64 * 2 ** 20                     # conservative (v7x-sized) fallback
    budget = (3 * phys) // 8                    # ~24 MiB on v7x, ~48 MiB on v5e/v6e
    in_sz = np.dtype(in_dtype).itemsize
    out_sz = np.dtype(out_dtype).itemsize

    # Split M evenly (no snapping M=257 -> 512); 16-alignment covers bf16 sublane packing.
    tm, Mp = _split_dim(M, 256, 16)

    # N lane-dense and large (fewer steps / Wt re-streams); moderate K blocks keep the
    # 4-tap block-sparsity usable. Shrink if the double-buffered resident set exceeds budget.
    n_cap, k_cap = 2048, 512
    while True:
        tn, Npad = _split_dim(Np, n_cap, 128)
        tk, Kpad = _split_dim(K, k_cap, 128)
        resident = (2 * (tm * tk + tk * tn) * in_sz + 2 * tm * tn * out_sz + tm * tn * 4)
        if resident <= budget or (n_cap <= 512 and k_cap <= 256):
            break
        if n_cap > 512:
            n_cap //= 2
        else:
            k_cap //= 2

    # v7x has two TensorCores: with a single i-tile, keep >= 2 parallel j-tiles when free.
    if Mp // tm == 1 and Npad // tn == 1 and Npad >= 256 and (Npad // 128) % 2 == 0:
        tn = Npad // 2

    vmem_limit = int(min((3 * phys) // 4, max(2 * resident, 32 * 2 ** 20)))
    return tm, tn, tk, Mp, Npad, Kpad, vmem_limit


# ----------------------------------------------------------------------------
# Init-time parameter setup (host-side, cached) — mirrors Cart2Polar.__init__.
# ----------------------------------------------------------------------------
def _bilinear_coords(polar_size, cart0, grid_hw, center_drop, xp):
    """Un-normalized pixel sampling coordinates (px, py), align_corners=True."""
    Hp, Wp = polar_size
    Hc, Wc = grid_hw
    C0 = float(cart0)
    yy, xx = xp.meshgrid(xp.arange(Hp, dtype=xp.float32),
                         xp.arange(Wp, dtype=xp.float32), indexing="ij")
    theta = xp.pi - xx / Wp * xp.pi * 2.0
    r = (Hp - 0.5 - yy + center_drop) / (Hp + center_drop) * C0 / 2.0
    index_x = r * xp.cos(theta) + C0 / 2.0
    index_y = r * xp.sin(theta) + C0 / 2.0
    gx = index_x / C0 * 2.0 - 1.0          # grid_sample x-component (width)
    gy = index_y / C0 * 2.0 - 1.0          # grid_sample y-component (height)
    px = (gx + 1.0) * (Wc - 1) / 2.0       # align_corners=True unnormalization
    py = (gy + 1.0) * (Hc - 1) / 2.0
    return px, py


@functools.lru_cache(maxsize=None)
def _build_params(polar_size, cart0, grid_hw, center_drop, k_pad, n_pad, tk, tn, dtype):
    """Bilinear resampling matrix Wt (Kpad, Npad) + per-j-tile nonzero k-block map."""
    Hp, Wp = polar_size
    Hc, Wc = grid_hw
    px, py = _bilinear_coords(polar_size, cart0, grid_hw, center_drop, np)

    x0 = np.floor(px); y0 = np.floor(py)
    x1 = x0 + 1.0;     y1 = y0 + 1.0
    wx1 = px - x0;     wx0 = 1.0 - wx1
    wy1 = py - y0;     wy0 = 1.0 - wy1

    Np_ = Hp * Wp
    wt = np.zeros((k_pad, n_pad), dtype=np.float32)
    p_idx = np.arange(Np_)

    def add(xi, yi, w):
        # padding_mode='zeros': out-of-bounds taps contribute nothing.
        valid = (xi >= 0) & (xi <= Wc - 1) & (yi >= 0) & (yi <= Hc - 1)
        xi_c = np.clip(xi, 0, Wc - 1).astype(np.int64)
        yi_c = np.clip(yi, 0, Hc - 1).astype(np.int64)
        flat = (yi_c * Wc + xi_c).reshape(-1)
        wv = np.where(valid, w, 0.0).reshape(-1).astype(np.float32)
        np.add.at(wt, (flat, p_idx), wv)

    add(x0, y0, wx0 * wy0)
    add(x1, y0, wx1 * wy0)
    add(x0, y1, wx0 * wy1)
    add(x1, y1, wx1 * wy1)

    # Per-(j-tile) list of nonzero k-blocks for the block-sparse reduction.
    kb, nb = k_pad // tk, n_pad // tn
    blk_nz = (wt.reshape(kb, tk, nb, tn) != 0).any(axis=(1, 3))     # (kb, nb)
    kcount = blk_nz.sum(axis=0).astype(np.int32)                    # (nb,)
    s_max = int(max(1, kcount.max()))
    kmap = np.zeros((nb, s_max), dtype=np.int32)
    for j in range(nb):
        idx = np.flatnonzero(blk_nz[:, j])
        if idx.size:
            kmap[j, :idx.size] = idx
            kmap[j, idx.size:] = idx[-1]       # repeat last block -> pipeline skips the DMA
    nnz = int(kcount.sum())

    return (jnp.asarray(wt, dtype=dtype), jnp.asarray(kmap), jnp.asarray(kcount),
            s_max, nnz)


# ----------------------------------------------------------------------------
# Forward (mirrors Cart2Polar.forward).
# ----------------------------------------------------------------------------
@functools.partial(jax.jit, static_argnames=("polar_hw", "out_dtype", "compute_dtype",
                                             "tm", "tn", "tk", "s_max", "nnz_blocks",
                                             "vmem_limit"))
def _cart2polar_forward(grid_feat, wt, kmap, kcount, *, polar_hw, out_dtype, compute_dtype,
                        tm, tn, tk, s_max, nnz_blocks, vmem_limit):
    B, C, Hc, Wc = grid_feat.shape
    Hp, Wp = polar_hw
    M, K, Np_ = B * C, Hc * Wc, Hp * Wp
    Kpad, Npad = wt.shape
    Mp = _round_up(M, tm)

    x = grid_feat.reshape(M, K).astype(compute_dtype)
    if Mp != M or Kpad != K:
        x = jnp.pad(x, ((0, Mp - M), (0, Kpad - K)))

    y = _pallas_resample(x, wt, kmap, kcount, out_dtype, tm, tn, tk, s_max,
                         nnz_blocks, vmem_limit)            # (Mp, Npad) in out_dtype
    return y[:M, :Np_].reshape(B, C, Hp, Wp)


class Cart2Polar:
    """JAX/Pallas equivalent of the PyTorch Cart2Polar module (mode='in')."""

    def __init__(self, polar_size, cart_size, center_drop_grid_size=3.0, max_batch=8,
                 mode="in", compute_dtype=jnp.bfloat16):
        assert mode == "in"
        self.polar_size = (int(polar_size[0]), int(polar_size[1]))
        self.cart_size = (int(cart_size[0]), int(cart_size[1]))
        self.center_drop = float(center_drop_grid_size)
        self.max_batch = int(max_batch)
        self.compute_dtype = np.dtype(compute_dtype)   # bf16 MXU path by default; f32 opt-in

    def __call__(self, grid_feat, ref_feat):
        B, C, Hc, Wc = grid_feat.shape
        assert ref_feat.shape[0] == B and ref_feat.shape[1] == C
        assert tuple(ref_feat.shape[2:]) == self.polar_size
        # As in the module, every polar pixel of every batch row is overwritten, so for
        # B <= max_batch the result is exactly the resampled grid_feat (ref values unused).
        assert B <= self.max_batch
        Hp, Wp = self.polar_size
        M, K, Np_ = B * C, Hc * Wc, Hp * Wp
        out_dtype = np.dtype(ref_feat.dtype)

        tm, tn, tk, _, Npad, Kpad, vmem_limit = _pick_tiles(M, K, Np_, self.compute_dtype,
                                                            out_dtype)
        wt, kmap, kcount, s_max, nnz = _build_params(
            self.polar_size, float(self.cart_size[0]), (Hc, Wc), self.center_drop,
            Kpad, Npad, tk, tn, self.compute_dtype)
        return _cart2polar_forward(grid_feat, wt, kmap, kcount,
                                   polar_hw=self.polar_size, out_dtype=out_dtype,
                                   compute_dtype=self.compute_dtype,
                                   tm=tm, tn=tn, tk=tk, s_max=s_max, nnz_blocks=nnz,
                                   vmem_limit=vmem_limit)


# ----------------------------------------------------------------------------
# Pure-JAX gather-based reference (independent of the weight-matrix path).
# ----------------------------------------------------------------------------
def _reference_resample(grid_feat, polar_size, cart_size, center_drop):
    B, C, Hc, Wc = grid_feat.shape
    px, py = _bilinear_coords(tuple(polar_size), float(cart_size[0]), (Hc, Wc),
                              float(center_drop), jnp)
    x0 = jnp.floor(px); y0 = jnp.floor(py)
    x1 = x0 + 1.0;      y1 = y0 + 1.0
    wx1 = px - x0;      wx0 = 1.0 - wx1
    wy1 = py - y0;      wy0 = 1.0 - wy1

    def tap(xi, yi, w):
        valid = (xi >= 0) & (xi <= Wc - 1) & (yi >= 0) & (yi <= Hc - 1)
        xi_c = jnp.clip(xi, 0, Wc - 1).astype(jnp.int32)
        yi_c = jnp.clip(yi, 0, Hc - 1).astype(jnp.int32)
        vals = grid_feat[:, :, yi_c, xi_c]            # (B, C, Hp, Wp)
        return vals * jnp.where(valid, w, 0.0)

    return (tap(x0, y0, wx0 * wy0) + tap(x1, y0, wx1 * wy0)
            + tap(x0, y1, wx0 * wy1) + tap(x1, y1, wx1 * wy1))


if __name__ == "__main__":
    key = jax.random.PRNGKey(0)
    k1, k2, k3, k4 = jax.random.split(key, 4)

    # --- Config 1: small shapes from the module (single tile everywhere). -----------------
    polar_size = (8, 16)   # (Hp, Wp) -> Np = 128
    cart_size = (16, 16)   # (Hc, Wc) -> K  = 256
    B, C = 2, 4

    grid_feat = jax.random.normal(k1, (B, C, cart_size[0], cart_size[1]), dtype=jnp.float32)
    ref_feat = jax.random.normal(k2, (B, C, polar_size[0], polar_size[1]), dtype=jnp.float32)
    ref = _reference_resample(grid_feat, polar_size, cart_size, 3.0).astype(ref_feat.dtype)

    # bf16 MXU path (default)
    out_bf16 = jax.block_until_ready(Cart2Polar(polar_size, cart_size)(grid_feat, ref_feat))
    assert out_bf16.shape == ref_feat.shape and out_bf16.dtype == ref_feat.dtype
    assert jnp.allclose(out_bf16, ref, atol=3e-2, rtol=3e-2)

    # strict-numerics f32 path
    out_f32 = jax.block_until_ready(
        Cart2Polar(polar_size, cart_size, compute_dtype=jnp.float32)(grid_feat, ref_feat))
    assert jnp.allclose(out_f32, ref, atol=1e-4, rtol=1e-4)

    # --- Config 2: exercises multiple j-tiles / k-blocks and the sparse kmap path. --------
    polar_size2 = (16, 32)   # Np = 512
    cart_size2 = (32, 32)    # K  = 1024
    grid_feat2 = jax.random.normal(k3, (B, C, cart_size2[0], cart_size2[1]), dtype=jnp.float32)
    ref_feat2 = jax.random.normal(k4, (B, C, polar_size2[0], polar_size2[1]), dtype=jnp.float32)
    ref2 = _reference_resample(grid_feat2, polar_size2, cart_size2, 3.0).astype(ref_feat2.dtype)

    out2 = jax.block_until_ready(Cart2Polar(polar_size2, cart_size2)(grid_feat2, ref_feat2))
    assert out2.shape == ref_feat2.shape and out2.dtype == ref_feat2.dtype
    assert jnp.allclose(out2, ref2, atol=3e-2, rtol=3e-2)

    print("KERNEL_OK")
</pallas_src>

<mosaic_0001>
module attributes {stable_mosaic.version = 11 : i64} {
  func.func @_resample_kernel(%arg0: i32, %arg1: i32, %arg2: i32, %arg3: memref<1x1xi32, #tpu.memory_space<smem>>, %arg4: memref<1xi32, #tpu.memory_space<smem>>, %arg5: memref<16x256xbf16, #tpu.memory_space<vmem>>, %arg6: memref<256x128xbf16, #tpu.memory_space<vmem>>, %arg7: memref<16x128xf32, #tpu.memory_space<vmem>>, %arg8: memref<16x128xf32, #tpu.memory_space<vmem>>) attributes {dimension_semantics = [#tpu.dimension_semantics<parallel>, #tpu.dimension_semantics<parallel>, #tpu.dimension_semantics<arbitrary>], iteration_bounds = array<i64: 1, 1, 1>, scalar_prefetch = 2 : i64, scratch_operands = 1 : i64, tpu.core_type = #tpu.core_type<tc>, window_params = [{transform_indices = @transform_0, window_bounds = array<i64: 16, 256>}, {transform_indices = @transform_1, window_bounds = array<i64: 256, 128>}, {transform_indices = @transform_2, window_bounds = array<i64: 16, 128>}]} {
    %c0_i32 = arith.constant 0 : i32
    %0 = arith.cmpi eq, %arg2, %c0_i32 : i32
    %1 = arith.extui %0 : i1 to i32
    %c0_i32_0 = arith.constant 0 : i32
    %2 = arith.cmpi ne, %1, %c0_i32_0 : i32
    scf.if %2 {
      %cst = arith.constant 0.000000e+00 : f32
      %11 = vector.broadcast %cst : f32 to vector<16x128xf32>
      %c0 = arith.constant 0 : index
      %c0_4 = arith.constant 0 : index
      %12 = vector.load %arg8[%c0, %c0_4] : memref<16x128xf32, #tpu.memory_space<vmem>>, vector<16x128xf32>
      tpu.vector_store %arg8[%c0, %c0_4], %11 {strides = array<i32>} : memref<16x128xf32, #tpu.memory_space<vmem>>, vector<16x128xf32>,
    } else {
    }
    %3 = arith.index_cast %arg1 : i32 to index
    %4 = memref.load %arg4[%3] : memref<1xi32, #tpu.memory_space<smem>>
    %5 = arith.cmpi slt, %arg2, %4 : i32
    %6 = arith.extui %5 : i1 to i32
    %c0_i32_1 = arith.constant 0 : i32
    %7 = arith.cmpi ne, %6, %c0_i32_1 : i32
    scf.if %7 {
      %c0 = arith.constant 0 : index
      %c0_4 = arith.constant 0 : index
      %11 = vector.load %arg8[%c0, %c0_4] : memref<16x128xf32, #tpu.memory_space<vmem>>, vector<16x128xf32>
      %c0_5 = arith.constant 0 : index
      %c0_6 = arith.constant 0 : index
      %12 = vector.load %arg5[%c0_5, %c0_6] : memref<16x256xbf16, #tpu.memory_space<vmem>>, vector<16x256xbf16>
      %c0_7 = arith.constant 0 : index
      %c0_8 = arith.constant 0 : index
      %13 = vector.load %arg6[%c0_7, %c0_8] : memref<256x128xbf16, #tpu.memory_space<vmem>>, vector<256x128xbf16>
      %cst = arith.constant dense<0.000000e+00> : vector<16x128xf32>
      %14 = tpu.matmul %12, %13, %cst {dimension_numbers = #tpu.dot_dimension_numbers<[1], [0], [0], [1], [0, 0, 1, 1], [], []>} : vector<16x256xbf16>, vector<256x128xbf16>, vector<16x128xf32> -> vector<16x128xf32>
      %15 = arith.addf %11, %14 : vector<16x128xf32>
      %c0_9 = arith.constant 0 : index
      %c0_10 = arith.constant 0 : index
      %16 = vector.load %arg8[%c0_9, %c0_10] : memref<16x128xf32, #tpu.memory_space<vmem>>, vector<16x128xf32>
      tpu.vector_store %arg8[%c0_9, %c0_10], %15 {strides = array<i32>} : memref<16x128xf32, #tpu.memory_space<vmem>>, vector<16x128xf32>,
    } else {
    }
    %c0_i32_2 = arith.constant 0 : i32
    %8 = arith.cmpi eq, %arg2, %c0_i32_2 : i32
    %9 = arith.extui %8 : i1 to i32
    %c0_i32_3 = arith.constant 0 : i32
    %10 = arith.cmpi ne, %9, %c0_i32_3 : i32
    scf.if %10 {
      %c0 = arith.constant 0 : index
      %c0_4 = arith.constant 0 : index
      %11 = vector.load %arg8[%c0, %c0_4] : memref<16x128xf32, #tpu.memory_space<vmem>>, vector<16x128xf32>
      %c0_5 = arith.constant 0 : index
      %c0_6 = arith.constant 0 : index
      %12 = vector.load %arg7[%c0_5, %c0_6] : memref<16x128xf32, #tpu.memory_space<vmem>>, vector<16x128xf32>
      tpu.vector_store %arg7[%c0_5, %c0_6], %11 {strides = array<i32>} : memref<16x128xf32, #tpu.memory_space<vmem>>, vector<16x128xf32>,
    } else {
    }
    return
  }
  func.func @transform_0(%arg0: i32, %arg1: i32, %arg2: i32, %arg3: memref<1x1xi32, #tpu.memory_space<smem>>, %arg4: memref<1xi32, #tpu.memory_space<smem>>) -> (i32, i32) {
    %0 = arith.index_cast %arg1 : i32 to index
    %1 = arith.index_cast %arg2 : i32 to index
    %2 = memref.load %arg3[%0, %1] : memref<1x1xi32, #tpu.memory_space<smem>>
    %c0_i32 = arith.constant 0 : i32
    return %arg0, %2 : i32, i32
  }
  func.func @transform_1(%arg0: i32, %arg1: i32, %arg2: i32, %arg3: memref<1x1xi32, #tpu.memory_space<smem>>, %arg4: memref<1xi32, #tpu.memory_space<smem>>) -> (i32, i32) {
    %0 = arith.index_cast %arg1 : i32 to index
    %1 = arith.index_cast %arg2 : i32 to index
    %2 = memref.load %arg3[%0, %1] : memref<1x1xi32, #tpu.memory_space<smem>>
    %c0_i32 = arith.constant 0 : i32
    return %2, %arg1 : i32, i32
  }
  func.func @transform_2(%arg0: i32, %arg1: i32, %arg2: i32, %arg3: memref<1x1xi32, #tpu.memory_space<smem>>, %arg4: memref<1xi32, #tpu.memory_space<smem>>) -> (i32, i32) {
    %c0_i32 = arith.constant 0 : i32
    return %arg0, %arg1 : i32, i32
  }
}

</mosaic_0001>

<llo_original>
// kernel: _cart2polar_forward.1
$region0: #{_cart2polar_forward.1}
  #allocation0 [shape = 'u32[]', space=smem, size = 0x4, offset = 0x4, fixed_abs, tag = 'smem constant byte address 0x4 - core index']
  #allocation1 [shape = 'u32[144,128]{1,0:T(1,128)}', space=vmem, size = 0x12000, scoped, tag = 'internal scratch']
  #allocation2 [shape = 'f32[16,128]{1,0:T(8,128)}', space=vmem, size = 0x2000, scoped, tag = 'scratch operand']
  #allocation3 [shape = 's32[1]{0}', space=sflag, size = 0x4, scoped, tag = 'scoped memory for _cart2polar_forward.1']
  #allocation4 [shape = 's32[1,1]{1,0:T(1,128)S(6)}', space=smem, size = 0x200, scoped, tag = 'prefetched SMEM operand 0']
  #allocation5 [shape = 's32[1]{0:T(128)S(6)}', space=smem, size = 0x200, scoped, tag = 'prefetched SMEM operand 1']
  %s0 = inlined_call_operand.<no memory space> [shape: s32[1,1], index: 0, kind: input, shape index: {}]
  %s1 = inlined_call_operand.<no memory space> [shape: s32[1], index: 1, kind: input, shape index: {}]
  %s2 = inlined_call_operand.vmem [shape: bf16[16,256], index: 2, kind: input, shape index: {}]
  %s3 = inlined_call_operand.vmem [shape: bf16[256,128], index: 3, kind: input, shape index: {}]
  %s4 = inlined_call_operand.vmem [shape: f32[16,128], index: 4, kind: output, shape index: {}]
  %s5 = sld [smem:[#allocation0]]
  $region30: #{_cart2polar_forward.1} parent=0
    _
  %s7 = ssub.s32 1, %s5
  %s8 = scalar_select 0, %s7, %s5
  %9 = sst [smem:[#allocation4]] %s0
  %10 = sst [smem:[#allocation5]] %s1
  // Predicated region
  $region2: #{_cart2polar_forward.1} parent=0 // pred_check
    _
  $region3: #{_cart2polar_forward.1} parent=0 // pred_check_branch
    %12 = sbr.rel (0) target = $region5
  $region4: #{_cart2polar_forward.1} parent=0 // pred_region
    %s13 = sadd.s32 0, 0
    %s14 = smul.u32 %s13, 128
    %s15 = sadd.s32 %s14, 0
    %s16 = sld [smem:[#allocation4 + %s15]]
    %s17 = smul.u32 2, %s16
    %p18 = scmp.lt.s32.totalorder %s17, 1
    %s19 = scalar_select %p18, %s17, 1
    %s20 = smul.addr %s19, 4
    %s21 = scalar_lea.vmem %s2, %s20
    %s22 = sadd.s32 0, 0
    %s23 = smul.u32 %s22, 128
    %s24 = sadd.s32 %s23, 0
    %s25 = sld [smem:[#allocation4 + %s24]]
    %s26 = smul.u32 2, %s25
  $region5: #{_cart2polar_forward.1} parent=0 // pred_fallthru
    _
  // Predicated region
  $region6: #{_cart2polar_forward.1} parent=0 // pred_check
    _
  $region7: #{_cart2polar_forward.1} parent=0 // pred_check_branch
    %28 = sbr.rel (0) target = $region9
  $region8: #{_cart2polar_forward.1} parent=0 // pred_region
    %s29 = sadd.s32 0, 0
    %s30 = smul.u32 %s29, 128
    %s31 = sadd.s32 %s30, 0
    %s32 = sld [smem:[#allocation4 + %s31]]
    %s33 = smul.u32 32, %s32
    %p34 = scmp.lt.s32.totalorder %s33, 31
    %s35 = scalar_select %p34, %s33, 31
    %s36 = smul.addr %s35, 4
    %s37 = scalar_lea.vmem %s3, %s36
    %s38 = sadd.s32 0, 0
    %s39 = smul.u32 %s38, 128
    %s40 = sadd.s32 %s39, 0
    %s41 = sld [smem:[#allocation4 + %s40]]
    %s42 = smul.u32 32, %s41
  $region9: #{_cart2polar_forward.1} parent=0 // pred_fallthru
    _
  %s43 = sadd.s32 0, 0
  %s44 = smul.u32 %s43, 128
  %s45 = sadd.s32 %s44, 0
  %s46 = sld [smem:[#allocation4 + %s45]]
  %s47 = smul.u32 2, %s46
  %p48 = scmp.lt.s32.totalorder %s47, 1
  %s49 = scalar_select %p48, %s47, 1
  %s50 = smul.addr %s49, 4
  %s51 = scalar_lea.vmem %s2, %s50
  %s52 = sadd.s32 0, 0
  %s53 = smul.u32 %s52, 128
  %s54 = sadd.s32 %s53, 0
  %s55 = sld [smem:[#allocation4 + %s54]]
  %s56 = smul.u32 32, %s55
  %p57 = scmp.lt.s32.totalorder %s56, 31
  %s58 = scalar_select %p57, %s56, 31
  %s59 = smul.addr %s58, 4
  %s60 = scalar_lea.vmem %s3, %s59
  %s61 = sadd.s32 0, 0
  %s62 = smul.u32 %s61, 128
  %s63 = sadd.s32 %s62, 0
  %s64 = sld [smem:[#allocation4 + %s63]]
  %s65 = smul.u32 2, %s64
  %p66 = scmp.lt.s32.totalorder %s65, 1
  %s67 = scalar_select %p66, %s65, 1
  %s68 = smul.addr %s67, 4
  %s69 = scalar_lea.vmem %s2, %s68
  %s70 = sadd.s32 0, 0
  %s71 = smul.u32 %s70, 128
  %s72 = sadd.s32 %s71, 0
  %s73 = sld [smem:[#allocation4 + %s72]]
  %s74 = smul.u32 2, %s73
  %s75 = sadd.s32 0, 0
  %s76 = smul.u32 %s75, 128
  %s77 = sadd.s32 %s76, 0
  %s78 = sld [smem:[#allocation4 + %s77]]
  %s79 = smul.u32 32, %s78
  %p80 = scmp.lt.s32.totalorder %s79, 31
  %s81 = scalar_select %p80, %s79, 31
  %s82 = smul.addr %s81, 4
  %s83 = scalar_lea.vmem %s3, %s82
  %s84 = sadd.s32 0, 0
  %s85 = smul.u32 %s84, 128
  %s86 = sadd.s32 %s85, 0
  %s87 = sld [smem:[#allocation4 + %s86]]
  %s88 = smul.u32 32, %s87
  %p90 = scmp.eq.s32.totalorder 0, 0
  // Predicated region
  $region10: #{_cart2polar_forward.1} parent=0 // pred_check
    %p91 = pneg %p90
  $region11: #{_cart2polar_forward.1} parent=0 // pred_check_branch
    %93 = sbr.rel (%p91) target = $region13
  $region12: #{_cart2polar_forward.1} parent=0 // pred_region
    %94 = vst [vmem:[#allocation2] sm:$0xff] 0.0
    %95 = vst [vmem:[#allocation2 + $0x8] sm:$0xff] 0.0
  $region13: #{_cart2polar_forward.1} parent=0 // pred_fallthru
    _
  %s96 = sld [smem:[#allocation5]]
  %p97 = scmp.lt.s32.totalorder 0, %s96
  // Predicated region
  $region14: #{_cart2polar_forward.1} parent=0 // pred_check
    %p98 = pneg %p97
  $region15: #{_cart2polar_forward.1} parent=0 // pred_check_branch
    %100 = sbr.rel (%p98) target = $region17
  $region16: #{_cart2polar_forward.1} parent=0 // pred_region
    %v101 = vld [vmem:[#allocation2] sm:$0xff]
    %v102 = vld [vmem:[#allocation2 + $0x8] sm:$0xff]
    %v103 = vld [vmem:[%s69] sm:$0xff]
    %v104 = vld [vmem:[%s69 + $0x8] sm:$0xff]
    %v105 = vld [vmem:[%s83] sm:$0xf]
    %v106 = vld [vmem:[%s83 + $0x4] sm:$0xf]
    %v107 = vld [vmem:[%s83 + $0x8] sm:$0xf]
    %v108 = vld [vmem:[%s83 + $0xc] sm:$0xf]
    %v109 = vld [vmem:[%s83 + $0x10] sm:$0xf]
    %v110 = vld [vmem:[%s83 + $0x14] sm:$0xf]
    %v111 = vld [vmem:[%s83 + $0x18] sm:$0xf]
    %v112 = vld [vmem:[%s83 + $0x1c] sm:$0xf]
    %v113 = vld [vmem:[%s83 + $0x20] sm:$0xf]
    %v114 = vld [vmem:[%s83 + $0x24] sm:$0xf]
    %v115 = vld [vmem:[%s83 + $0x28] sm:$0xf]
    %v116 = vld [vmem:[%s83 + $0x2c] sm:$0xf]
    %v117 = vld [vmem:[%s83 + $0x30] sm:$0xf]
    %v118 = vld [vmem:[%s83 + $0x34] sm:$0xf]
    %v119 = vld [vmem:[%s83 + $0x38] sm:$0xf]
    %v120 = vld [vmem:[%s83 + $0x3c] sm:$0xf]
    %v121 = vld [vmem:[%s83 + $0x40] sm:$0xf]
    %v122 = vld [vmem:[%s83 + $0x44] sm:$0xf]
    %v123 = vld [vmem:[%s83 + $0x48] sm:$0xf]
    %v124 = vld [vmem:[%s83 + $0x4c] sm:$0xf]
    %v125 = vld [vmem:[%s83 + $0x50] sm:$0xf]
    %v126 = vld [vmem:[%s83 + $0x54] sm:$0xf]
    %v127 = vld [vmem:[%s83 + $0x58] sm:$0xf]
    %v128 = vld [vmem:[%s83 + $0x5c] sm:$0xf]
    %v129 = vld [vmem:[%s83 + $0x60] sm:$0xf]
    %v130 = vld [vmem:[%s83 + $0x64] sm:$0xf]
    %v131 = vld [vmem:[%s83 + $0x68] sm:$0xf]
    %v132 = vld [vmem:[%s83 + $0x6c] sm:$0xf]
    %v133 = vld [vmem:[%s83 + $0x70] sm:$0xf]
    %v134 = vld [vmem:[%s83 + $0x74] sm:$0xf]
    %v135 = vld [vmem:[%s83 + $0x78] sm:$0xf]
    %v136 = vld [vmem:[%s83 + $0x7c] sm:$0xf]
    %v139 = vunpack.c.l.b16 %v103
    %v140 = vunpack.c.h.b16 %v103
    %v141 = vunpack.c.l.b16 %v104
    %v142 = vunpack.c.h.b16 %v104
    %v143 = vpack.c.b16 %v141, %v139
    %v144 = vpack.c.b16 %v142, %v140
    %v179 = vunpack.c.l.b16 %v105
    %v180 = vunpack.c.l.b16 %v106
    %v181 = vunpack.c.l.b16 %v107
    %v182 = vunpack.c.l.b16 %v108
    %v183 = vunpack.c.l.b16 %v109
    %v184 = vunpack.c.l.b16 %v110
    %v185 = vunpack.c.l.b16 %v111
    %v186 = vunpack.c.l.b16 %v112
    %v187 = vunpack.c.l.b16 %v113
    %v188 = vunpack.c.l.b16 %v114
    %v189 = vunpack.c.l.b16 %v115
    %v190 = vunpack.c.l.b16 %v116
    %v191 = vunpack.c.l.b16 %v117
    %v192 = vunpack.c.l.b16 %v118
    %v193 = vunpack.c.l.b16 %v119
    %v194 = vunpack.c.l.b16 %v120
    %v195 = vunpack.c.l.b16 %v121
    %v196 = vunpack.c.l.b16 %v122
    %v197 = vunpack.c.l.b16 %v123
    %v198 = vunpack.c.l.b16 %v124
    %v199 = vunpack.c.l.b16 %v125
    %v200 = vunpack.c.l.b16 %v126
    %v201 = vunpack.c.l.b16 %v127
    %v202 = vunpack.c.l.b16 %v128
    %v203 = vunpack.c.l.b16 %v129
    %v204 = vunpack.c.l.b16 %v130
    %v205 = vunpack.c.l.b16 %v131
    %v206 = vunpack.c.l.b16 %v132
    %v207 = vunpack.c.l.b16 %v133
    %v208 = vunpack.c.l.b16 %v134
    %v209 = vunpack.c.l.b16 %v135
    %v210 = vunpack.c.l.b16 %v136
    %v211 = vpack.c.b16 %v180, %v179
    %v212 = vpack.c.b16 %v182, %v181
    %v213 = vpack.c.b16 %v184, %v183
    %v214 = vpack.c.b16 %v186, %v185
    %v215 = vpack.c.b16 %v188, %v187
    %v216 = vpack.c.b16 %v190, %v189
    %v217 = vpack.c.b16 %v192, %v191
    %v218 = vpack.c.b16 %v194, %v193
    %v219 = vpack.c.b16 %v196, %v195
    %v220 = vpack.c.b16 %v198, %v197
    %v221 = vpack.c.b16 %v200, %v199
    %v222 = vpack.c.b16 %v202, %v201
    %v223 = vpack.c.b16 %v204, %v203
    %v224 = vpack.c.b16 %v206, %v205
    %v225 = vpack.c.b16 %v208, %v207
    %v226 = vpack.c.b16 %v210, %v209
    %243 = vmatprep.subr.bf16.mxu0 0
    %244 = vmatpush1.bf16.msra.mxu0 %v211
    %245 = vmatprep.subr.bf16.mxu0 0
    %246 = vmatpush1.bf16.msra.mxu0 %v212
    %247 = vmatprep.subr.bf16.mxu0 0
    %248 = vmatpush1.bf16.msra.mxu0 %v213
    %249 = vmatprep.subr.bf16.mxu0 0
    %250 = vmatpush1.bf16.msra.mxu0 %v214
    %251 = vmatprep.subr.bf16.mxu0 0
    %252 = vmatpush1.bf16.msra.mxu0 %v215
    %253 = vmatprep.subr.bf16.mxu0 0
    %254 = vmatpush1.bf16.msra.mxu0 %v216
    %255 = vmatprep.subr.bf16.mxu0 0
    %256 = vmatpush1.bf16.msra.mxu0 %v217
    %257 = vmatprep.subr.bf16.mxu0 0
    %258 = vmatpush1.bf16.msra.mxu0 %v218
    %259 = vmatprep.subr.bf16.mxu0 0
    %260 = vmatpush1.bf16.msra.mxu0 %v219
    %261 = vmatprep.subr.bf16.mxu0 0
    %262 = vmatpush1.bf16.msra.mxu0 %v220
    %263 = vmatprep.subr.bf16.mxu0 0
    %264 = vmatpush1.bf16.msra.mxu0 %v221
    %265 = vmatprep.subr.bf16.mxu0 0
    %266 = vmatpush1.bf16.msra.mxu0 %v222
    %267 = vmatprep.subr.bf16.mxu0 0
    %268 = vmatpush1.bf16.msra.mxu0 %v223
    %269 = vmatprep.subr.bf16.mxu0 0
    %270 = vmatpush1.bf16.msra.mxu0 %v224
    %271 = vmatprep.subr.bf16.mxu0 0
    %272 = vmatpush1.bf16.msra.mxu0 %v225
    %273 = vmatprep.subr.bf16.mxu0 0
    %274 = vmatpush1.bf16.msra.mxu0 %v226
    %275 = vmatprep.mubr.bf16.mxu0 %v144
    %276 = vmatmul.mubr.bf16.gmra.mrb[0].mxu0 %v143
    %v277 = vpop.f32.mrb[0].mxu0
    %v278 = vadd.f32 0.0, %v277
    %v279 = vpop.f32.mrb[0].mxu0
    %v280 = vpop.f32.mrb[0].mxu0
    %v281 = vadd.f32 0.0, %v280
    %v282 = vpop.f32.mrb[0].mxu0
    %283 = vdwg.mxu0
    %v284 = vadd.f32 %v101, %v278
    %v285 = vadd.f32 %v102, %v281
    %286 = vst [vmem:[#allocation2] sm:$0xff] %v284
    %287 = vst [vmem:[#allocation2 + $0x8] sm:$0xff] %v285
  $region17: #{_cart2polar_forward.1} parent=0 // pred_fallthru
    _
  // Predicated region
  $region18: #{_cart2polar_forward.1} parent=0 // pred_check
    %p288 = pneg %p90
  $region19: #{_cart2polar_forward.1} parent=0 // pred_check_branch
    %290 = sbr.rel (%p288) target = $region21
  $region20: #{_cart2polar_forward.1} parent=0 // pred_region
    %v291 = vld [vmem:[#allocation2] sm:$0xff]
    %v292 = vld [vmem:[#allocation2 + $0x8] sm:$0xff]
    %293 = vst [vmem:[%s4] sm:$0xff] %v291
    %294 = vst [vmem:[%s4 + $0x8] sm:$0xff] %v292
  $region21: #{_cart2polar_forward.1} parent=0 // pred_fallthru
    _
  // Predicated region
  $region22: #{_cart2polar_forward.1} parent=0 // pred_check
    _
  $region23: #{_cart2polar_forward.1} parent=0 // pred_check_branch
    %296 = sbr.rel (0) target = $region25
  $region24: #{_cart2polar_forward.1} parent=0 // pred_region
    _
  $region25: #{_cart2polar_forward.1} parent=0 // pred_fallthru
    _
  // Predicated region
  $region26: #{_cart2polar_forward.1} parent=0 // pred_check
    _
  $region27: #{_cart2polar_forward.1} parent=0 // pred_check_branch
    %298 = sbr.rel (0) target = $region29
  $region28: #{_cart2polar_forward.1} parent=0 // pred_region
    _
  $region29: #{_cart2polar_forward.1} parent=0 // pred_fallthru
    _

</llo_original>
